<compile_context>
chip_gen: v5e
topology: v5e:2x2
jax: 0.10.0
libtpu: 0.0.40
codegen_flags: <defaults>
</compile_context>

<pallas_src>
import jax
import jax.numpy as jnp
from jax.experimental import pallas as pl
from jax.experimental.pallas import tpu as pltpu


LANES = 128          # TPU lane width; head is padded to this
TB_MAX = 1024        # batch-tile rows (f32/bf16 activations; well under VMEM limits)


def _round_up(x, m):
    return ((x + m - 1) // m) * m


def _leaky_relu(z, slope=0.1):
    return jnp.where(z >= 0, z, slope * z)


def policy_kernel(x_ref,
                  w1_ref, b1_ref,
                  w2_ref, b2_ref,
                  w3_ref, b3_ref,
                  w4_ref, b4_ref,
                  o_ref):
    # x tile: [TB, in_dim] bf16; weights bf16; biases f32.
    x = x_ref[...]

    h = jnp.dot(x, w1_ref[...], preferred_element_type=jnp.float32)       # [TB, H] f32
    h = _leaky_relu(h + b1_ref[...])

    h = jnp.dot(h.astype(jnp.bfloat16), w2_ref[...],
                preferred_element_type=jnp.float32)
    h = _leaky_relu(h + b2_ref[...])

    h = jnp.dot(h.astype(jnp.bfloat16), w3_ref[...],
                preferred_element_type=jnp.float32)
    h = _leaky_relu(h + b3_ref[...])

    logits = jnp.dot(h.astype(jnp.bfloat16), w4_ref[...],
                     preferred_element_type=jnp.float32)                  # [TB, 128]
    logits = logits + b4_ref[...]       # padded lanes carry -1e30 -> exp == 0

    # softmax over the (padded) last dim; padded lanes contribute exactly 0.
    m = jnp.max(logits, axis=-1, keepdims=True)
    e = jnp.exp(logits - m)
    denom = jnp.sum(e, axis=-1, keepdims=True)
    o_ref[...] = e * pl.reciprocal(denom, approx=True)


def prepare_params(params):
    """Cast weights to bf16 once and pad the head to a lane-dense 128 columns."""
    H = params["w1"].shape[1]
    n = params["w4"].shape[1]
    n_pad = _round_up(max(n, LANES), LANES)

    w4p = jnp.zeros((H, n_pad), jnp.float32).at[:, :n].set(params["w4"])
    b4p = jnp.full((1, n_pad), -1e30, jnp.float32).at[:, :n].set(
        params["b4"].astype(jnp.float32))

    return {
        "w1": params["w1"].astype(jnp.bfloat16), "b1": params["b1"].astype(jnp.float32),
        "w2": params["w2"].astype(jnp.bfloat16), "b2": params["b2"].astype(jnp.float32),
        "w3": params["w3"].astype(jnp.bfloat16), "b3": params["b3"].astype(jnp.float32),
        "w4": w4p.astype(jnp.bfloat16),          "b4": b4p,
        "n": n, "n_pad": n_pad, "H": H,
    }


def policy_forward(x, params):
    """x: [B, in_dim] float32; params: raw f32 dict from init_params()."""
    pp = prepare_params(params)
    B, in_dim = x.shape
    H, n, n_pad = pp["H"], pp["n"], pp["n_pad"]

    # Pad batch to a multiple of the tile; cast activations to bf16 once here
    # so the x DMA moves half the bytes.
    TB = min(TB_MAX, _round_up(B, 8))
    Bp = _round_up(B, TB)
    xp = jnp.zeros((Bp, in_dim), jnp.bfloat16).at[:B].set(x.astype(jnp.bfloat16))

    grid = (pl.cdiv(Bp, TB),)

    # Activations stream per grid step; weights/biases stay resident (block (0,0)).
    x_spec = pl.BlockSpec((TB, in_dim), lambda i: (i, 0))
    res = lambda shape: pl.BlockSpec(shape, lambda i: (0, 0))
    out_spec = pl.BlockSpec((TB, n_pad), lambda i: (i, 0))

    args = (xp,
            pp["w1"], pp["b1"],
            pp["w2"], pp["b2"],
            pp["w3"], pp["b3"],
            pp["w4"], pp["b4"])

    flops = 2 * Bp * (in_dim * H + 2 * H * H + H * n_pad)
    transcendentals = Bp * n_pad + Bp                     # exp + reciprocal
    bytes_accessed = (xp.size * 2                         # bf16 x
                      + (in_dim * H + 2 * H * H + H * n_pad) * 2   # bf16 weights
                      + (3 * H + n_pad) * 4               # f32 biases
                      + Bp * n_pad * 4)                   # f32 out

    out = pl.pallas_call(
        policy_kernel,
        out_shape=jax.ShapeDtypeStruct((Bp, n_pad), jnp.float32),
        grid=grid,
        in_specs=[x_spec,
                  res(pp["w1"].shape), res(pp["b1"].shape),
                  res(pp["w2"].shape), res(pp["b2"].shape),
                  res(pp["w3"].shape), res(pp["b3"].shape),
                  res(pp["w4"].shape), res(pp["b4"].shape)],
        out_specs=out_spec,
        compiler_params=pltpu.CompilerParams(
            dimension_semantics=("parallel",)),
        cost_estimate=pl.CostEstimate(
            flops=flops,
            transcendentals=transcendentals,
            bytes_accessed=bytes_accessed),
    )(*args)

    return out[:B, :n]


def init_params(key, in_dim=128, hidden=128, n=4):
    """Deterministic init mimicking torch.nn.Linear default (U[-1/sqrt(fan_in), +])."""
    def linear(k, fan_in, fan_out):
        kw, kb = jax.random.split(k)
        bound = 1.0 / jnp.sqrt(fan_in)
        w = jax.random.uniform(kw, (fan_in, fan_out), jnp.float32, -bound, bound)
        b = jax.random.uniform(kb, (1, fan_out), jnp.float32, -bound, bound)
        return w, b

    k1, k2, k3, k4 = jax.random.split(key, 4)
    w1, b1 = linear(k1, in_dim, hidden)
    w2, b2 = linear(k2, hidden, hidden)
    w3, b3 = linear(k3, hidden, hidden)
    w4, b4 = linear(k4, hidden, n)
    return {"w1": w1, "b1": b1, "w2": w2, "b2": b2,
            "w3": w3, "b3": b3, "w4": w4, "b4": b4}


def _reference_forward(x, p):
    """Pure-JAX reference using the same bf16 matmul quantization as the kernel."""
    h = x.astype(jnp.bfloat16)
    for i in (1, 2, 3):
        h = jnp.dot(h, p[f"w{i}"].astype(jnp.bfloat16),
                    preferred_element_type=jnp.float32) + p[f"b{i}"]
        h = jnp.where(h >= 0, h, 0.1 * h).astype(jnp.bfloat16)
    logits = jnp.dot(h, p["w4"].astype(jnp.bfloat16),
                     preferred_element_type=jnp.float32) + p["b4"]
    return jax.nn.softmax(logits, axis=-1)


if __name__ == "__main__":
    key = jax.random.PRNGKey(0)
    k_params, k_x = jax.random.split(key)

    B, in_dim, n = 8, 128, 4
    params = init_params(k_params, in_dim=in_dim, hidden=128, n=n)
    x = jax.random.normal(k_x, (B, in_dim), jnp.float32)

    out = policy_forward(x, params)
    out = jax.block_until_ready(out)

    ref = _reference_forward(x, params)
    assert out.shape == (B, n)
    assert bool(jnp.all(jnp.isfinite(out))), "non-finite probabilities"
    # approx reciprocal (EUP) + bf16 matmuls -> ~1e-3 tolerance vs reference
    assert jnp.allclose(out, ref, atol=2e-3, rtol=2e-3), "mismatch vs reference"
    assert jnp.allclose(jnp.sum(out, axis=-1), 1.0, atol=2e-3), "softmax rows must sum to 1"

    print("KERNEL_OK")
</pallas_src>

<mosaic_0001>
module attributes {stable_mosaic.version = 11 : i64} {
  func.func @policy_kernel(%arg0: i32, %arg1: memref<8x128xbf16, #tpu.memory_space<vmem>>, %arg2: memref<128x128xbf16, #tpu.memory_space<vmem>>, %arg3: memref<1x128xf32, #tpu.memory_space<vmem>>, %arg4: memref<128x128xbf16, #tpu.memory_space<vmem>>, %arg5: memref<1x128xf32, #tpu.memory_space<vmem>>, %arg6: memref<128x128xbf16, #tpu.memory_space<vmem>>, %arg7: memref<1x128xf32, #tpu.memory_space<vmem>>, %arg8: memref<128x128xbf16, #tpu.memory_space<vmem>>, %arg9: memref<1x128xf32, #tpu.memory_space<vmem>>, %arg10: memref<8x128xf32, #tpu.memory_space<vmem>>) attributes {dimension_semantics = [#tpu.dimension_semantics<parallel>], iteration_bounds = array<i64: 1>, scalar_prefetch = 0 : i64, scratch_operands = 0 : i64, tpu.core_type = #tpu.core_type<tc>, window_params = [{transform_indices = @transform_0, window_bounds = array<i64: 8, 128>}, {pipeline_mode = #tpu.pipeline_mode<synchronous>, transform_indices = @transform_1, window_bounds = array<i64: 128, 128>}, {pipeline_mode = #tpu.pipeline_mode<synchronous>, transform_indices = @transform_2, window_bounds = array<i64: 1, 128>}, {pipeline_mode = #tpu.pipeline_mode<synchronous>, transform_indices = @transform_3, window_bounds = array<i64: 128, 128>}, {pipeline_mode = #tpu.pipeline_mode<synchronous>, transform_indices = @transform_4, window_bounds = array<i64: 1, 128>}, {pipeline_mode = #tpu.pipeline_mode<synchronous>, transform_indices = @transform_5, window_bounds = array<i64: 128, 128>}, {pipeline_mode = #tpu.pipeline_mode<synchronous>, transform_indices = @transform_6, window_bounds = array<i64: 1, 128>}, {pipeline_mode = #tpu.pipeline_mode<synchronous>, transform_indices = @transform_7, window_bounds = array<i64: 128, 128>}, {pipeline_mode = #tpu.pipeline_mode<synchronous>, transform_indices = @transform_8, window_bounds = array<i64: 1, 128>}, {transform_indices = @transform_9, window_bounds = array<i64: 8, 128>}]} {
    %c0 = arith.constant 0 : index
    %c0_0 = arith.constant 0 : index
    %0 = vector.load %arg1[%c0, %c0_0] : memref<8x128xbf16, #tpu.memory_space<vmem>>, vector<8x128xbf16>
    %c0_1 = arith.constant 0 : index
    %c0_2 = arith.constant 0 : index
    %1 = vector.load %arg2[%c0_1, %c0_2] : memref<128x128xbf16, #tpu.memory_space<vmem>>, vector<128x128xbf16>
    %cst = arith.constant dense<0.000000e+00> : vector<8x128xf32>
    %2 = tpu.matmul %0, %1, %cst {dimension_numbers = #tpu.dot_dimension_numbers<[1], [0], [0], [1], [0, 0, 1, 1], [], []>} : vector<8x128xbf16>, vector<128x128xbf16>, vector<8x128xf32> -> vector<8x128xf32>
    %c0_3 = arith.constant 0 : index
    %c0_4 = arith.constant 0 : index
    %3 = vector.load %arg3[%c0_3, %c0_4] : memref<1x128xf32, #tpu.memory_space<vmem>>, vector<1x128xf32>
    %4 = vector.broadcast %3 : vector<1x128xf32> to vector<8x128xf32>
    %5 = arith.addf %2, %4 : vector<8x128xf32>
    %cst_5 = arith.constant 0.000000e+00 : f32
    %6 = vector.broadcast %cst_5 : f32 to vector<8x128xf32>
    %7 = arith.cmpf oge, %5, %6 : vector<8x128xf32>
    %cst_6 = arith.constant 1.000000e-01 : f32
    %8 = vector.broadcast %cst_6 : f32 to vector<8x128xf32>
    %9 = arith.mulf %8, %5 : vector<8x128xf32>
    %10 = arith.select %7, %5, %9 : vector<8x128xi1>, vector<8x128xf32>
    %11 = arith.truncf %10 : vector<8x128xf32> to vector<8x128xbf16>
    %c0_7 = arith.constant 0 : index
    %c0_8 = arith.constant 0 : index
    %12 = vector.load %arg4[%c0_7, %c0_8] : memref<128x128xbf16, #tpu.memory_space<vmem>>, vector<128x128xbf16>
    %cst_9 = arith.constant dense<0.000000e+00> : vector<8x128xf32>
    %13 = tpu.matmul %11, %12, %cst_9 {dimension_numbers = #tpu.dot_dimension_numbers<[1], [0], [0], [1], [0, 0, 1, 1], [], []>} : vector<8x128xbf16>, vector<128x128xbf16>, vector<8x128xf32> -> vector<8x128xf32>
    %c0_10 = arith.constant 0 : index
    %c0_11 = arith.constant 0 : index
    %14 = vector.load %arg5[%c0_10, %c0_11] : memref<1x128xf32, #tpu.memory_space<vmem>>, vector<1x128xf32>
    %15 = vector.broadcast %14 : vector<1x128xf32> to vector<8x128xf32>
    %16 = arith.addf %13, %15 : vector<8x128xf32>
    %cst_12 = arith.constant 0.000000e+00 : f32
    %17 = vector.broadcast %cst_12 : f32 to vector<8x128xf32>
    %18 = arith.cmpf oge, %16, %17 : vector<8x128xf32>
    %cst_13 = arith.constant 1.000000e-01 : f32
    %19 = vector.broadcast %cst_13 : f32 to vector<8x128xf32>
    %20 = arith.mulf %19, %16 : vector<8x128xf32>
    %21 = arith.select %18, %16, %20 : vector<8x128xi1>, vector<8x128xf32>
    %22 = arith.truncf %21 : vector<8x128xf32> to vector<8x128xbf16>
    %c0_14 = arith.constant 0 : index
    %c0_15 = arith.constant 0 : index
    %23 = vector.load %arg6[%c0_14, %c0_15] : memref<128x128xbf16, #tpu.memory_space<vmem>>, vector<128x128xbf16>
    %cst_16 = arith.constant dense<0.000000e+00> : vector<8x128xf32>
    %24 = tpu.matmul %22, %23, %cst_16 {dimension_numbers = #tpu.dot_dimension_numbers<[1], [0], [0], [1], [0, 0, 1, 1], [], []>} : vector<8x128xbf16>, vector<128x128xbf16>, vector<8x128xf32> -> vector<8x128xf32>
    %c0_17 = arith.constant 0 : index
    %c0_18 = arith.constant 0 : index
    %25 = vector.load %arg7[%c0_17, %c0_18] : memref<1x128xf32, #tpu.memory_space<vmem>>, vector<1x128xf32>
    %26 = vector.broadcast %25 : vector<1x128xf32> to vector<8x128xf32>
    %27 = arith.addf %24, %26 : vector<8x128xf32>
    %cst_19 = arith.constant 0.000000e+00 : f32
    %28 = vector.broadcast %cst_19 : f32 to vector<8x128xf32>
    %29 = arith.cmpf oge, %27, %28 : vector<8x128xf32>
    %cst_20 = arith.constant 1.000000e-01 : f32
    %30 = vector.broadcast %cst_20 : f32 to vector<8x128xf32>
    %31 = arith.mulf %30, %27 : vector<8x128xf32>
    %32 = arith.select %29, %27, %31 : vector<8x128xi1>, vector<8x128xf32>
    %33 = arith.truncf %32 : vector<8x128xf32> to vector<8x128xbf16>
    %c0_21 = arith.constant 0 : index
    %c0_22 = arith.constant 0 : index
    %34 = vector.load %arg8[%c0_21, %c0_22] : memref<128x128xbf16, #tpu.memory_space<vmem>>, vector<128x128xbf16>
    %cst_23 = arith.constant dense<0.000000e+00> : vector<8x128xf32>
    %35 = tpu.matmul %33, %34, %cst_23 {dimension_numbers = #tpu.dot_dimension_numbers<[1], [0], [0], [1], [0, 0, 1, 1], [], []>} : vector<8x128xbf16>, vector<128x128xbf16>, vector<8x128xf32> -> vector<8x128xf32>
    %c0_24 = arith.constant 0 : index
    %c0_25 = arith.constant 0 : index
    %36 = vector.load %arg9[%c0_24, %c0_25] : memref<1x128xf32, #tpu.memory_space<vmem>>, vector<1x128xf32>
    %37 = vector.broadcast %36 : vector<1x128xf32> to vector<8x128xf32>
    %38 = arith.addf %35, %37 : vector<8x128xf32>
    %cst_26 = arith.constant dense<0xFF800000> : vector<8xf32>
    %39 = vector.multi_reduction <maximumf>, %38, %cst_26 [1] : vector<8x128xf32> to vector<8xf32>
    %40 = vector.shape_cast %39 : vector<8xf32> to vector<8x1xf32>
    %41 = vector.broadcast %40 : vector<8x1xf32> to vector<8x128xf32>
    %42 = arith.subf %38, %41 : vector<8x128xf32>
    %43 = math.exp %42 : vector<8x128xf32>
    %cst_27 = arith.constant dense<0.000000e+00> : vector<8xf32>
    %44 = vector.multi_reduction <add>, %43, %cst_27 [1] : vector<8x128xf32> to vector<8xf32>
    %45 = vector.shape_cast %44 : vector<8xf32> to vector<8x1xf32>
    %46 = tpu.reciprocal %45 {approx = true} : vector<8x1xf32> -> vector<8x1xf32>
    %47 = vector.broadcast %46 : vector<8x1xf32> to vector<8x128xf32>
    %48 = arith.mulf %43, %47 : vector<8x128xf32>
    %c0_28 = arith.constant 0 : index
    %c0_29 = arith.constant 0 : index
    %49 = vector.load %arg10[%c0_28, %c0_29] : memref<8x128xf32, #tpu.memory_space<vmem>>, vector<8x128xf32>
    tpu.vector_store %arg10[%c0_28, %c0_29], %48 {strides = array<i32>} : memref<8x128xf32, #tpu.memory_space<vmem>>, vector<8x128xf32>,
    return
  }
  func.func @transform_0(%arg0: i32) -> (i32, i32) {
    %c0_i32 = arith.constant 0 : i32
    %c0_i32_0 = arith.constant 0 : i32
    return %arg0, %c0_i32 : i32, i32
  }
  func.func @transform_1(%arg0: i32) -> (i32, i32) {
    %c0_i32 = arith.constant 0 : i32
    %c0_i32_0 = arith.constant 0 : i32
    %c0_i32_1 = arith.constant 0 : i32
    return %c0_i32, %c0_i32_0 : i32, i32
  }
  func.func @transform_2(%arg0: i32) -> (i32, i32) {
    %c0_i32 = arith.constant 0 : i32
    %c0_i32_0 = arith.constant 0 : i32
    %c0_i32_1 = arith.constant 0 : i32
    return %c0_i32, %c0_i32_0 : i32, i32
  }
  func.func @transform_3(%arg0: i32) -> (i32, i32) {
    %c0_i32 = arith.constant 0 : i32
    %c0_i32_0 = arith.constant 0 : i32
    %c0_i32_1 = arith.constant 0 : i32
    return %c0_i32, %c0_i32_0 : i32, i32
  }
  func.func @transform_4(%arg0: i32) -> (i32, i32) {
    %c0_i32 = arith.constant 0 : i32
    %c0_i32_0 = arith.constant 0 : i32
    %c0_i32_1 = arith.constant 0 : i32
    return %c0_i32, %c0_i32_0 : i32, i32
  }
  func.func @transform_5(%arg0: i32) -> (i32, i32) {
    %c0_i32 = arith.constant 0 : i32
    %c0_i32_0 = arith.constant 0 : i32
    %c0_i32_1 = arith.constant 0 : i32
    return %c0_i32, %c0_i32_0 : i32, i32
  }
  func.func @transform_6(%arg0: i32) -> (i32, i32) {
    %c0_i32 = arith.constant 0 : i32
    %c0_i32_0 = arith.constant 0 : i32
    %c0_i32_1 = arith.constant 0 : i32
    return %c0_i32, %c0_i32_0 : i32, i32
  }
  func.func @transform_7(%arg0: i32) -> (i32, i32) {
    %c0_i32 = arith.constant 0 : i32
    %c0_i32_0 = arith.constant 0 : i32
    %c0_i32_1 = arith.constant 0 : i32
    return %c0_i32, %c0_i32_0 : i32, i32
  }
  func.func @transform_8(%arg0: i32) -> (i32, i32) {
    %c0_i32 = arith.constant 0 : i32
    %c0_i32_0 = arith.constant 0 : i32
    %c0_i32_1 = arith.constant 0 : i32
    return %c0_i32, %c0_i32_0 : i32, i32
  }
  func.func @transform_9(%arg0: i32) -> (i32, i32) {
    %c0_i32 = arith.constant 0 : i32
    %c0_i32_0 = arith.constant 0 : i32
    return %arg0, %c0_i32 : i32, i32
  }
}

</mosaic_0001>

<llo_original>
// kernel: tpu_custom_call.1
$region0: #{tpu_custom_call.1}
  #allocation0 [shape = 'u32[]', space=smem, size = 0x4, offset = 0x4, fixed_abs, tag = 'smem constant byte address 0x4 - core index']
  #allocation1 [shape = 'u32[72,128]{1,0:T(1,128)}', space=vmem, size = 0x9000, scoped, tag = 'internal scratch']
  %s0 = inlined_call_operand.hbm [shape: bf16[8,128], index: 0, kind: input, shape index: {}]
  %s1 = inlined_call_operand.hbm [shape: bf16[128,128], index: 1, kind: input, shape index: {}]
  %s2 = inlined_call_operand.vmem [shape: f32[1,128], index: 2, kind: input, shape index: {}]
  %s3 = inlined_call_operand.hbm [shape: bf16[128,128], index: 3, kind: input, shape index: {}]
  %s4 = inlined_call_operand.vmem [shape: f32[1,128], index: 4, kind: input, shape index: {}]
  %s5 = inlined_call_operand.hbm [shape: bf16[128,128], index: 5, kind: input, shape index: {}]
  %s6 = inlined_call_operand.vmem [shape: f32[1,128], index: 6, kind: input, shape index: {}]
  %s7 = inlined_call_operand.hbm [shape: bf16[128,128], index: 7, kind: input, shape index: {}]
  %s8 = inlined_call_operand.vmem [shape: f32[1,128], index: 8, kind: input, shape index: {}]
  %s9 = inlined_call_operand.hbm [shape: f32[8,128], index: 9, kind: output, shape index: {}]
  %s10 = sld [smem:[#allocation0]]
  $region66: #{tpu_custom_call.1} parent=0
    _
  %s12 = ssub.s32 1, %s10
  %s13 = scalar_select 0, %s12, %s10
  $region1: #{tpu_custom_call.1} parent=0
    #allocation2 [shape = 'u8[2048]{0}', space=vmem, size = 0x800, scoped, tag = 'input window, operand 0, single buffered']
    #allocation3 [shape = 's32[1]{0}', space=sflag, size = 0x4, scoped, tag = 'scoped memory for tpu_custom_call.1']
    #allocation4 [shape = 's32[1]{0}', space=sflag, size = 0x4, scoped, tag = 'scoped memory for tpu_custom_call.1']
    #allocation5 [shape = 'u8[32768]{0}', space=vmem, size = 0x8000, scoped, tag = 'input window, operand 1, single buffered']
    #allocation6 [shape = 's32[1]{0}', space=sflag, size = 0x4, scoped, tag = 'scoped memory for tpu_custom_call.1']
    #allocation7 [shape = 'u8[32768]{0}', space=vmem, size = 0x8000, scoped, tag = 'input window, operand 3, single buffered']
    #allocation8 [shape = 'u8[32768]{0}', space=vmem, size = 0x8000, scoped, tag = 'input window, operand 5, single buffered']
    #allocation9 [shape = 's32[1]{0}', space=sflag, size = 0x4, scoped, tag = 'scoped memory for tpu_custom_call.1']
    #allocation10 [shape = 'u8[32768]{0}', space=vmem, size = 0x8000, scoped, tag = 'input window, operand 7, single buffered']
    #allocation11 [shape = 'u8[4096]{0}', space=vmem, size = 0x1000, scoped, tag = 'output window, operand 0, single buffered']
    %14 = vsyncpa [#allocation3], 0
    %15 = vsyncpa [#allocation6], 0
    %16 = vsyncpa [#allocation9], 0
    %17 = vsyncpa [#allocation4], 0
    // Predicated region
    $region2: #{tpu_custom_call.1} parent=1 // pred_check
      _
    $region3: #{tpu_custom_call.1} parent=1 // pred_check_branch
      %19 = sbr.rel (0) target = $region5
    $region4: #{tpu_custom_call.1} parent=1 // pred_region
      %21 = vsyncadd [#allocation3], 0
      %s23 = sshll.u32 %s0, 4
      %s24 = int_to_ptr.hbm [resolvable:$true] %s23
      %s25 = sshll.u32 [#allocation2], 4
      %s26 = int_to_ptr.vmem [resolvable:$true] %s25
      %28 = dma.hbm_to_vmem [thread:$0]  %s24, 64, %s26, [#allocation3]
    $region5: #{tpu_custom_call.1} parent=1 // pred_fallthru
      _
    // Predicated region
    $region6: #{tpu_custom_call.1} parent=1 // pred_check
      _
    $region7: #{tpu_custom_call.1} parent=1 // pred_check_branch
      %30 = sbr.rel (0) target = $region9
    $region8: #{tpu_custom_call.1} parent=1 // pred_region
      %32 = vsyncadd [#allocation6], 0
      %s33 = sshll.u32 %s1, 4
      %s34 = int_to_ptr.hbm [resolvable:$true] %s33
      %s35 = sshll.u32 [#allocation5], 4
      %s36 = int_to_ptr.vmem [resolvable:$true] %s35
      %41 = dma.hbm_to_vmem [thread:$0]  %s34, 1024, %s36, [#allocation6], 64, 64, 4
    $region9: #{tpu_custom_call.1} parent=1 // pred_fallthru
      _
    // Predicated region
    $region10: #{tpu_custom_call.1} parent=1 // pred_check
      _
    $region11: #{tpu_custom_call.1} parent=1 // pred_check_branch
      %43 = sbr.rel (0) target = $region13
    $region12: #{tpu_custom_call.1} parent=1 // pred_region
      _
    $region13: #{tpu_custom_call.1} parent=1 // pred_fallthru
      _
    // Predicated region
    $region14: #{tpu_custom_call.1} parent=1 // pred_check
      _
    $region15: #{tpu_custom_call.1} parent=1 // pred_check_branch
      %45 = sbr.rel (0) target = $region17
    $region16: #{tpu_custom_call.1} parent=1 // pred_region
      %47 = vsyncadd [#allocation6], 0
      %s48 = sshll.u32 %s3, 4
      %s49 = int_to_ptr.hbm [resolvable:$true] %s48
      %s50 = sshll.u32 [#allocation7], 4
      %s51 = int_to_ptr.vmem [resolvable:$true] %s50
      %56 = dma.hbm_to_vmem [thread:$0]  %s49, 1024, %s51, [#allocation6], 64, 64, 4
    $region17: #{tpu_custom_call.1} parent=1 // pred_fallthru
      _
    // Predicated region
    $region18: #{tpu_custom_call.1} parent=1 // pred_check
      _
    $region19: #{tpu_custom_call.1} parent=1 // pred_check_branch
      %58 = sbr.rel (0) target = $region21
    $region20: #{tpu_custom_call.1} parent=1 // pred_region
      _
    $region21: #{tpu_custom_call.1} parent=1 // pred_fallthru
      _
    // Predicated region
    $region22: #{tpu_custom_call.1} parent=1 // pred_check
      _
    $region23: #{tpu_custom_call.1} parent=1 // pred_check_branch
      %60 = sbr.rel (0) target = $region25
    $region24: #{tpu_custom_call.1} parent=1 // pred_region
      %62 = vsyncadd [#allocation9], 0
      %s63 = sshll.u32 %s5, 4
      %s64 = int_to_ptr.hbm [resolvable:$true] %s63
      %s65 = sshll.u32 [#allocation8], 4
      %s66 = int_to_ptr.vmem [resolvable:$true] %s65
      %71 = dma.hbm_to_vmem [thread:$0]  %s64, 1024, %s66, [#allocation9], 64, 64, 4
    $region25: #{tpu_custom_call.1} parent=1 // pred_fallthru
      _
    // Predicated region
    $region26: #{tpu_custom_call.1} parent=1 // pred_check
      _
    $region27: #{tpu_custom_call.1} parent=1 // pred_check_branch
      %73 = sbr.rel (0) target = $region29
    $region28: #{tpu_custom_call.1} parent=1 // pred_region
      _
    $region29: #{tpu_custom_call.1} parent=1 // pred_fallthru
      _
    // Predicated region
    $region30: #{tpu_custom_call.1} parent=1 // pred_check
      _
    $region31: #{tpu_custom_call.1} parent=1 // pred_check_branch
      %75 = sbr.rel (0) target = $region33
    $region32: #{tpu_custom_call.1} parent=1 // pred_region
      %77 = vsyncadd [#allocation9], 0
      %s78 = sshll.u32 %s7, 4
      %s79 = int_to_ptr.hbm [resolvable:$true] %s78
      %s80 = sshll.u32 [#allocation10], 4
      %s81 = int_to_ptr.vmem [resolvable:$true] %s80
      %86 = dma.hbm_to_vmem [thread:$0]  %s79, 1024, %s81, [#allocation9], 64, 64, 4
    $region33: #{tpu_custom_call.1} parent=1 // pred_fallthru
      _
    // Predicated region
    $region34: #{tpu_custom_call.1} parent=1 // pred_check
      _
    $region35: #{tpu_custom_call.1} parent=1 // pred_check_branch
      %88 = sbr.rel (0) target = $region37
    $region36: #{tpu_custom_call.1} parent=1 // pred_region
      _
    $region37: #{tpu_custom_call.1} parent=1 // pred_fallthru
      _
    // Predicated region
    $region38: #{tpu_custom_call.1} parent=1 // pred_check
      _
    $region39: #{tpu_custom_call.1} parent=1 // pred_check_branch
      %90 = sbr.rel (0) target = $region41
    $region40: #{tpu_custom_call.1} parent=1 // pred_region
      %92 = dma.done [#allocation3], 64
    $region41: #{tpu_custom_call.1} parent=1 // pred_fallthru
      _
    // Predicated region
    $region42: #{tpu_custom_call.1} parent=1 // pred_check
      _
    $region43: #{tpu_custom_call.1} parent=1 // pred_check_branch
      %94 = sbr.rel (0) target = $region45
    $region44: #{tpu_custom_call.1} parent=1 // pred_region
      %96 = dma.done [#allocation6], 1024
    $region45: #{tpu_custom_call.1} parent=1 // pred_fallthru
      _
    // Predicated region
    $region46: #{tpu_custom_call.1} parent=1 // pred_check
      _
    $region47: #{tpu_custom_call.1} parent=1 // pred_check_branch
      %98 = sbr.rel (0) target = $region49
    $region48: #{tpu_custom_call.1} parent=1 // pred_region
      %100 = dma.done [#allocation6], 1024
    $region49: #{tpu_custom_call.1} parent=1 // pred_fallthru
      _
    // Predicated region
    $region50: #{tpu_custom_call.1} parent=1 // pred_check
      _
    $region51: #{tpu_custom_call.1} parent=1 // pred_check_branch
      %102 = sbr.rel (0) target = $region53
    $region52: #{tpu_custom_call.1} parent=1 // pred_region
      %104 = dma.done [#allocation9], 1024
    $region53: #{tpu_custom_call.1} parent=1 // pred_fallthru
      _
    // Predicated region
    $region54: #{tpu_custom_call.1} parent=1 // pred_check
      _
    $region55: #{tpu_custom_call.1} parent=1 // pred_check_branch
      %106 = sbr.rel (0) target = $region57
    $region56: #{tpu_custom_call.1} parent=1 // pred_region
      %108 = dma.done [#allocation9], 1024
    $region57: #{tpu_custom_call.1} parent=1 // pred_fallthru
      _
    %v109 = vld [vmem:[#allocation2] sm:$0xf]
    %v110 = vld [vmem:[#allocation5] sm:$0xf]
    %v111 = vld [vmem:[#allocation5 + $0x4] sm:$0xf]
    %v112 = vld [vmem:[#allocation5 + $0x8] sm:$0xf]
    %v113 = vld [vmem:[#allocation5 + $0xc] sm:$0xf]
    %v114 = vld [vmem:[#allocation5 + $0x10] sm:$0xf]
    %v115 = vld [vmem:[#allocation5 + $0x14] sm:$0xf]
    %v116 = vld [vmem:[#allocation5 + $0x18] sm:$0xf]
    %v117 = vld [vmem:[#allocation5 + $0x1c] sm:$0xf]
    %v118 = vld [vmem:[#allocation5 + $0x20] sm:$0xf]
    %v119 = vld [vmem:[#allocation5 + $0x24] sm:$0xf]
    %v120 = vld [vmem:[#allocation5 + $0x28] sm:$0xf]
    %v121 = vld [vmem:[#allocation5 + $0x2c] sm:$0xf]
    %v122 = vld [vmem:[#allocation5 + $0x30] sm:$0xf]
    %v123 = vld [vmem:[#allocation5 + $0x34] sm:$0xf]
    %v124 = vld [vmem:[#allocation5 + $0x38] sm:$0xf]
    %v125 = vld [vmem:[#allocation5 + $0x3c] sm:$0xf]
    %v126 = vld [vmem:[%s2] sm:$0x1]
    %v128 = vperm.slane %v126, 0
    %v146 = vunpack.c.l.b16 %v110
    %v147 = vunpack.c.l.b16 %v111
    %v148 = vunpack.c.l.b16 %v112
    %v149 = vunpack.c.l.b16 %v113
    %v150 = vunpack.c.l.b16 %v114
    %v151 = vunpack.c.l.b16 %v115
    %v152 = vunpack.c.l.b16 %v116
    %v153 = vunpack.c.l.b16 %v117
    %v154 = vunpack.c.l.b16 %v118
    %v155 = vunpack.c.l.b16 %v119
    %v156 = vunpack.c.l.b16 %v120
    %v157 = vunpack.c.l.b16 %v121
    %v158 = vunpack.c.l.b16 %v122
    %v159 = vunpack.c.l.b16 %v123
    %v160 = vunpack.c.l.b16 %v124
    %v161 = vunpack.c.l.b16 %v125
    %v162 = vpack.c.b16 %v147, %v146
    %v163 = vpack.c.b16 %v149, %v148
    %v164 = vpack.c.b16 %v151, %v150
    %v165 = vpack.c.b16 %v153, %v152
    %v166 = vpack.c.b16 %v155, %v154
    %v167 = vpack.c.b16 %v157, %v156
    %v168 = vpack.c.b16 %v159, %v158
    %v169 = vpack.c.b16 %v161, %v160
    %178 = vmatpush.bf16.msra.mxu0 %v169
    %179 = vmatpush.bf16.msra.mxu0 %v168
    %180 = vmatpush.bf16.msra.mxu0 %v167
    %181 = vmatpush.bf16.msra.mxu0 %v166
    %182 = vmatpush.bf16.msra.mxu0 %v165
    %183 = vmatpush.bf16.msra.mxu0 %v164
    %184 = vmatpush.bf16.msra.mxu0 %v163
    %185 = vmatpush.bf16.msra.mxu0 %v162
    %186 = vmatmul.bf16.gmra.mxu0 %v109
    %v187 = vpop.f32.mrf.mxu0
    %v188 = vadd.f32 %v128, %v187
    %v189 = vpop.f32.mrf.mxu0
    %190 = vdwg.mxu0
    %vm191 = vcmp.ge.f32.partialorder %v188, 0.0
    %v192 = vmul.f32 %v188, 0.1
    %v193 = vsel %vm191, %v188, %v192
    %v194 = vpack.c.bf16 %v193, %v193
    %v195 = vld [vmem:[#allocation7] sm:$0xf]
    %v196 = vld [vmem:[#allocation7 + $0x4] sm:$0xf]
    %v197 = vld [vmem:[#allocation7 + $0x8] sm:$0xf]
    %v198 = vld [vmem:[#allocation7 + $0xc] sm:$0xf]
    %v199 = vld [vmem:[#allocation7 + $0x10] sm:$0xf]
    %v200 = vld [vmem:[#allocation7 + $0x14] sm:$0xf]
    %v201 = vld [vmem:[#allocation7 + $0x18] sm:$0xf]
    %v202 = vld [vmem:[#allocation7 + $0x1c] sm:$0xf]
    %v203 = vld [vmem:[#allocation7 + $0x20] sm:$0xf]
    %v204 = vld [vmem:[#allocation7 + $0x24] sm:$0xf]
    %v205 = vld [vmem:[#allocation7 + $0x28] sm:$0xf]
    %v206 = vld [vmem:[#allocation7 + $0x2c] sm:$0xf]
    %v207 = vld [vmem:[#allocation7 + $0x30] sm:$0xf]
    %v208 = vld [vmem:[#allocation7 + $0x34] sm:$0xf]
    %v209 = vld [vmem:[#allocation7 + $0x38] sm:$0xf]
    %v210 = vld [vmem:[#allocation7 + $0x3c] sm:$0xf]
    %v211 = vld [vmem:[%s4] sm:$0x1]
    %v213 = vperm.slane %v211, 0
    %v231 = vunpack.c.l.b16 %v195
    %v232 = vunpack.c.l.b16 %v196
    %v233 = vunpack.c.l.b16 %v197
    %v234 = vunpack.c.l.b16 %v198
    %v235 = vunpack.c.l.b16 %v199
    %v236 = vunpack.c.l.b16 %v200
    %v237 = vunpack.c.l.b16 %v201
    %v238 = vunpack.c.l.b16 %v202
    %v239 = vunpack.c.l.b16 %v203
    %v240 = vunpack.c.l.b16 %v204
    %v241 = vunpack.c.l.b16 %v205
    %v242 = vunpack.c.l.b16 %v206
    %v243 = vunpack.c.l.b16 %v207
    %v244 = vunpack.c.l.b16 %v208
    %v245 = vunpack.c.l.b16 %v209
    %v246 = vunpack.c.l.b16 %v210
    %v247 = vpack.c.b16 %v232, %v231
    %v248 = vpack.c.b16 %v234, %v233
    %v249 = vpack.c.b16 %v236, %v235
    %v250 = vpack.c.b16 %v238, %v237
    %v251 = vpack.c.b16 %v240, %v239
    %v252 = vpack.c.b16 %v242, %v241
    %v253 = vpack.c.b16 %v244, %v243
    %v254 = vpack.c.b16 %v246, %v245
    %263 = vmatpush.bf16.msra.mxu0 %v254
    %264 = vmatpush.bf16.msra.mxu0 %v253
    %265 = vmatpush.bf16.msra.mxu0 %v252
    %266 = vmatpush.bf16.msra.mxu0 %v251
    %267 = vmatpush.bf16.msra.mxu0 %v250
    %268 = vmatpush.bf16.msra.mxu0 %v249
    %269 = vmatpush.bf16.msra.mxu0 %v248
    %270 = vmatpush.bf16.msra.mxu0 %v247
    %271 = vmatmul.bf16.gmra.mxu0 %v194
    %v272 = vpop.f32.mrf.mxu0
    %v273 = vadd.f32 %v213, %v272
    %v274 = vpop.f32.mrf.mxu0
    %275 = vdwg.mxu0
    %vm276 = vcmp.ge.f32.partialorder %v273, 0.0
    %v277 = vmul.f32 %v273, 0.1
    %v278 = vsel %vm276, %v273, %v277
    %v279 = vpack.c.bf16 %v278, %v278
    %v280 = vld [vmem:[#allocation8] sm:$0xf]
    %v281 = vld [vmem:[#allocation8 + $0x4] sm:$0xf]
    %v282 = vld [vmem:[#allocation8 + $0x8] sm:$0xf]
    %v283 = vld [vmem:[#allocation8 + $0xc] sm:$0xf]
    %v284 = vld [vmem:[#allocation8 + $0x10] sm:$0xf]
    %v285 = vld [vmem:[#allocation8 + $0x14] sm:$0xf]
    %v286 = vld [vmem:[#allocation8 + $0x18] sm:$0xf]
    %v287 = vld [vmem:[#allocation8 + $0x1c] sm:$0xf]
    %v288 = vld [vmem:[#allocation8 + $0x20] sm:$0xf]
    %v289 = vld [vmem:[#allocation8 + $0x24] sm:$0xf]
    %v290 = vld [vmem:[#allocation8 + $0x28] sm:$0xf]
    %v291 = vld [vmem:[#allocation8 + $0x2c] sm:$0xf]
    %v292 = vld [vmem:[#allocation8 + $0x30] sm:$0xf]
    %v293 = vld [vmem:[#allocation8 + $0x34] sm:$0xf]
    %v294 = vld [vmem:[#allocation8 + $0x38] sm:$0xf]
    %v295 = vld [vmem:[#allocation8 + $0x3c] sm:$0xf]
    %v296 = vld [vmem:[%s6] sm:$0x1]
    %v298 = vperm.slane %v296, 0
    %v316 = vunpack.c.l.b16 %v280
    %v317 = vunpack.c.l.b16 %v281
    %v318 = vunpack.c.l.b16 %v282
    %v319 = vunpack.c.l.b16 %v283
    %v320 = vunpack.c.l.b16 %v284
    %v321 = vunpack.c.l.b16 %v285
    %v322 = vunpack.c.l.b16 %v286
    %v323 = vunpack.c.l.b16 %v287
    %v324 = vunpack.c.l.b16 %v288
    %v325 = vunpack.c.l.b16 %v289
    %v326 = vunpack.c.l.b16 %v290
    %v327 = vunpack.c.l.b16 %v291
    %v328 = vunpack.c.l.b16 %v292
    %v329 = vunpack.c.l.b16 %v293
    %v330 = vunpack.c.l.b16 %v294
    %v331 = vunpack.c.l.b16 %v295
    %v332 = vpack.c.b16 %v317, %v316
    %v333 = vpack.c.b16 %v319, %v318
    %v334 = vpack.c.b16 %v321, %v320
    %v335 = vpack.c.b16 %v323, %v322
    %v336 = vpack.c.b16 %v325, %v324
    %v337 = vpack.c.b16 %v327, %v326
    %v338 = vpack.c.b16 %v329, %v328
    %v339 = vpack.c.b16 %v331, %v330
    %348 = vmatpush.bf16.msra.mxu0 %v339
    %349 = vmatpush.bf16.msra.mxu0 %v338
    %350 = vmatpush.bf16.msra.mxu0 %v337
    %351 = vmatpush.bf16.msra.mxu0 %v336
    %352 = vmatpush.bf16.msra.mxu0 %v335
    %353 = vmatpush.bf16.msra.mxu0 %v334
    %354 = vmatpush.bf16.msra.mxu0 %v333
    %355 = vmatpush.bf16.msra.mxu0 %v332
    %356 = vmatmul.bf16.gmra.mxu0 %v279
    %v357 = vpop.f32.mrf.mxu0
    %v358 = vadd.f32 %v298, %v357
    %v359 = vpop.f32.mrf.mxu0
    %360 = vdwg.mxu0
    %vm361 = vcmp.ge.f32.partialorder %v358, 0.0
    %v362 = vmul.f32 %v358, 0.1
    %v363 = vsel %vm361, %v358, %v362
    %v364 = vpack.c.bf16 %v363, %v363
    %v365 = vld [vmem:[#allocation10] sm:$0xf]
    %v366 = vld [vmem:[#allocation10 + $0x4] sm:$0xf]
    %v367 = vld [vmem:[#allocation10 + $0x8] sm:$0xf]
    %v368 = vld [vmem:[#allocation10 + $0xc] sm:$0xf]
    %v369 = vld [vmem:[#allocation10 + $0x10] sm:$0xf]
    %v370 = vld [vmem:[#allocation10 + $0x14] sm:$0xf]
    %v371 = vld [vmem:[#allocation10 + $0x18] sm:$0xf]
    %v372 = vld [vmem:[#allocation10 + $0x1c] sm:$0xf]
    %v373 = vld [vmem:[#allocation10 + $0x20] sm:$0xf]
    %v374 = vld [vmem:[#allocation10 + $0x24] sm:$0xf]
    %v375 = vld [vmem:[#allocation10 + $0x28] sm:$0xf]
    %v376 = vld [vmem:[#allocation10 + $0x2c] sm:$0xf]
    %v377 = vld [vmem:[#allocation10 + $0x30] sm:$0xf]
    %v378 = vld [vmem:[#allocation10 + $0x34] sm:$0xf]
    %v379 = vld [vmem:[#allocation10 + $0x38] sm:$0xf]
    %v380 = vld [vmem:[#allocation10 + $0x3c] sm:$0xf]
    %v381 = vld [vmem:[%s8] sm:$0x1]
    %v383 = vperm.slane %v381, 0
    %v401 = vunpack.c.l.b16 %v365
    %v402 = vunpack.c.l.b16 %v366
    %v403 = vunpack.c.l.b16 %v367
    %v404 = vunpack.c.l.b16 %v368
    %v405 = vunpack.c.l.b16 %v369
    %v406 = vunpack.c.l.b16 %v370
    %v407 = vunpack.c.l.b16 %v371
    %v408 = vunpack.c.l.b16 %v372
    %v409 = vunpack.c.l.b16 %v373
    %v410 = vunpack.c.l.b16 %v374
    %v411 = vunpack.c.l.b16 %v375
    %v412 = vunpack.c.l.b16 %v376
    %v413 = vunpack.c.l.b16 %v377
    %v414 = vunpack.c.l.b16 %v378
    %v415 = vunpack.c.l.b16 %v379
    %v416 = vunpack.c.l.b16 %v380
    %v417 = vpack.c.b16 %v402, %v401
    %v418 = vpack.c.b16 %v404, %v403
    %v419 = vpack.c.b16 %v406, %v405
    %v420 = vpack.c.b16 %v408, %v407
    %v421 = vpack.c.b16 %v410, %v409
    %v422 = vpack.c.b16 %v412, %v411
    %v423 = vpack.c.b16 %v414, %v413
    %v424 = vpack.c.b16 %v416, %v415
    %433 = vmatpush.bf16.msra.mxu0 %v424
    %434 = vmatpush.bf16.msra.mxu0 %v423
    %435 = vmatpush.bf16.msra.mxu0 %v422
    %436 = vmatpush.bf16.msra.mxu0 %v421
    %437 = vmatpush.bf16.msra.mxu0 %v420
    %438 = vmatpush.bf16.msra.mxu0 %v419
    %439 = vmatpush.bf16.msra.mxu0 %v418
    %440 = vmatpush.bf16.msra.mxu0 %v417
    %441 = vmatmul.bf16.gmra.mxu0 %v364
    %v442 = vpop.f32.mrf.mxu0
    %v443 = vadd.f32 %v383, %v442
    %v444 = vpop.f32.mrf.mxu0
    %445 = vdwg.mxu0
    %446 = vmax.xlane.f32.xlu0 %v443
    %v447 = vpop.xlane.xlu0 %446
    %v448 = vsub.f32 %v443, %v447
    %v449 = vmul.f32 %v448, 1.442695
    %v450 = vpow.pop %v449
    %451 = vadd.xlane.f32.xlu0 %v450
    %v452 = vpop.xlane.xlu0 %451
    %v453 = vrcp.pop %v452
    %v454 = vmul.f32 %v450, %v453
    %455 = vst [vmem:[#allocation11] sm:$0xff] %v454
    // Predicated region
    $region58: #{tpu_custom_call.1} parent=1 // pred_check
      _
    $region59: #{tpu_custom_call.1} parent=1 // pred_check_branch
      %457 = sbr.rel (0) target = $region61
    $region60: #{tpu_custom_call.1} parent=1 // pred_region
      %459 = vsyncadd [#allocation4], 0
      %s461 = sshll.u32 [#allocation11], 4
      %s462 = int_to_ptr.vmem [resolvable:$true] %s461
      %s463 = sshll.u32 %s9, 4
      %s464 = int_to_ptr.hbm [resolvable:$true] %s463
      %466 = dma.vmem_to_hbm [thread:$0]  %s462, 128, %s464, [#allocation4]
    $region61: #{tpu_custom_call.1} parent=1 // pred_fallthru
      _
    // Predicated region
    $region62: #{tpu_custom_call.1} parent=1 // pred_check
      _
    $region63: #{tpu_custom_call.1} parent=1 // pred_check_branch
      %468 = sbr.rel (0) target = $region65
    $region64: #{tpu_custom_call.1} parent=1 // pred_region
      %470 = dma.done [#allocation4], 128
    $region65: #{tpu_custom_call.1} parent=1 // pred_fallthru
      _
    %471 = vsyncpa [#allocation3], 1
    %472 = vsyncpa [#allocation6], 1
    %473 = vsyncpa [#allocation9], 1
    %474 = vsyncpa [#allocation4], 1

</llo_original>
